<compile_context>
chip_gen: v6e
topology: v6e:2x2x1
jax: 0.10.0
libtpu: 0.0.40
codegen_flags: <defaults>
</compile_context>

<pallas_src>
import jax
import jax.numpy as jnp
from jax.experimental import pallas as pl
from jax.experimental.pallas import tpu as pltpu


def _round_up(n, m):
    return (n + m - 1) // m * m


def _net_kernel(xt_ref, w1_ref, b1_ref, w3_ref, b3_ref, w4_ref, b4_ref, o_ref):
    # xt_ref: (F, TB) bf16 -- batch on the 128-lane axis (lane-dense).
    xt = xt_ref[...]
    # h1 = relu(W1 @ x_t + b1)      (32, TB); bf16 x bf16 -> f32 accumulate.
    h1 = jnp.dot(w1_ref[...], xt, preferred_element_type=jnp.float32)
    h1 = jnp.maximum(h1 + b1_ref[...], 0.0)
    # h3 = relu(W3 @ h1 + b3)       (16, TB); cast h1 to bf16 for single-pass MXU.
    h3 = jnp.dot(w3_ref[...], h1.astype(jnp.bfloat16),
                 preferred_element_type=jnp.float32)
    h3 = jnp.maximum(h3 + b3_ref[...], 0.0)
    # out = sigmoid(w4 . h3 + b4)   (1, TB); VPU multiply + sublane reduce (f32).
    logits = jnp.sum(w4_ref[...] * h3, axis=0, keepdims=True) + b4_ref[...]
    o_ref[...] = jax.nn.sigmoid(logits).astype(o_ref.dtype)


def net_forward(x, params, *, tb=16384, min_grid_steps=2):
    """Fused forward pass of Net (fc1 -> relu -> fc3 -> relu -> fc4 -> sigmoid).

    x: (B, F) float32 (batch-major, PyTorch convention)
    params: dict with
        w1 (32, F),  b1 (32, 1)
        w3 (16, 32), b3 (16, 1)
        w4 (16, 1),  b4 (1, 1)
    returns: (B, 1) float32
    """
    B, F = x.shape
    w1 = params["w1"].astype(jnp.bfloat16)
    w3 = params["w3"].astype(jnp.bfloat16)
    b1, b3 = params["b1"], params["b3"]
    w4, b4 = params["w4"], params["b4"]

    # Cast first (halves transpose traffic), then transpose so the batch sits
    # on the 128-lane axis.  allow_input_fusion lets XLA fuse this producer
    # into the pallas_call operand -> x is read from HBM once.
    xt = x.astype(jnp.bfloat16).T  # (F, B)

    # Batch tile: lane-multiple, at most `tb`, and chosen so that moderate /
    # large batches get >= `min_grid_steps` grid steps (both v7x TensorCores).
    if B <= 128:
        TB = B  # single block covering the full (tiny) batch; no 128 padding needed
    else:
        per_step = _round_up(-(-B // max(1, int(min_grid_steps))), 128)
        TB = max(128, min(_round_up(int(tb), 128), per_step))
    grid = (pl.cdiv(B, TB),)

    # Scoped-VMEM budget: double/triple-buffered bf16 x tile + f32 intermediates,
    # with headroom; capped at 56 MiB (< v7x's 64 MiB physical VMEM).
    x_tile_bytes = F * TB * 2
    inter_bytes = (32 + 16 + 1) * TB * 4
    out_tile_bytes = TB * 4
    vmem_need = 3 * x_tile_bytes + 2 * out_tile_bytes + 2 * inter_bytes + (1 << 20)
    vmem_limit = int(min(56 * 2**20, max(32 * 2**20, 2 * vmem_need)))

    cost = pl.CostEstimate(
        flops=2 * B * (F * 32 + 32 * 16 + 16),
        transcendentals=2 * B,  # sigmoid = exp + reciprocal
        bytes_accessed=B * F * 2          # bf16 x stream
        + B * 4                           # f32 output
        + (w1.size + w3.size) * 2         # bf16 weights
        + (b1.size + b3.size + w4.size + b4.size) * 4,
    )

    out_t = pl.pallas_call(
        _net_kernel,
        out_shape=jax.ShapeDtypeStruct((1, B), jnp.float32),
        grid=grid,
        in_specs=[
            pl.BlockSpec((F, TB), lambda i: (0, i)),       # streamed x tile (bf16)
            pl.BlockSpec((32, F), lambda i: (0, 0)),       # resident weights
            pl.BlockSpec((32, 1), lambda i: (0, 0)),
            pl.BlockSpec((16, 32), lambda i: (0, 0)),
            pl.BlockSpec((16, 1), lambda i: (0, 0)),
            pl.BlockSpec((16, 1), lambda i: (0, 0)),
            pl.BlockSpec((1, 1), lambda i: (0, 0)),
        ],
        out_specs=pl.BlockSpec((1, TB), lambda i: (0, i)),  # lane-dense output
        compiler_params=pltpu.CompilerParams(
            dimension_semantics=("parallel",),
            vmem_limit_bytes=vmem_limit,
            allow_input_fusion=[True, False, False, False, False, False, False],
        ),
        cost_estimate=cost,
    )(xt, w1, b1, w3, b3, w4, b4)

    return out_t.T  # (B, 1)


def init_params(key, input_shape):
    """Deterministic init mirroring PyTorch nn.Linear default:
    U(-1/sqrt(fan_in), 1/sqrt(fan_in)). Weights stored (out, in), biases
    (out, 1) to match the batch-on-lanes kernel layout (w4/b4 kept as
    (16, 1)/(1, 1) for the VPU reduction)."""

    def linear_t(k, fan_in, fan_out):
        kw, kb = jax.random.split(k)
        bound = 1.0 / jnp.sqrt(jnp.asarray(fan_in, jnp.float32))
        w = jax.random.uniform(kw, (fan_out, fan_in), jnp.float32, -bound, bound)
        b = jax.random.uniform(kb, (fan_out, 1), jnp.float32, -bound, bound)
        return w, b

    k1, k3, k4 = jax.random.split(key, 3)
    w1, b1 = linear_t(k1, input_shape, 32)
    w3, b3 = linear_t(k3, 32, 16)
    w4t, b4 = linear_t(k4, 16, 1)  # w4t: (1, 16), b4: (1, 1)
    return {"w1": w1, "b1": b1, "w3": w3, "b3": b3, "w4": w4t.T, "b4": b4}


def net_forward_ref_f32(x, p):
    """Full-f32 reference (PyTorch-style semantics)."""
    h1 = jnp.maximum(x @ p["w1"].T + p["b1"].T, 0.0)
    h3 = jnp.maximum(h1 @ p["w3"].T + p["b3"].T, 0.0)
    return jax.nn.sigmoid(h3 @ p["w4"] + p["b4"])


def net_forward_ref_bf16(x, p):
    """Reference with the same bf16-input / f32-accumulate matmuls as the kernel."""
    xb = x.astype(jnp.bfloat16)
    w1b = p["w1"].astype(jnp.bfloat16)
    w3b = p["w3"].astype(jnp.bfloat16)
    h1 = jnp.maximum(
        jnp.dot(xb, w1b.T, preferred_element_type=jnp.float32) + p["b1"].T, 0.0)
    h3 = jnp.maximum(
        jnp.dot(h1.astype(jnp.bfloat16), w3b.T,
                preferred_element_type=jnp.float32) + p["b3"].T, 0.0)
    logits = jnp.sum(h3 * p["w4"].T, axis=-1, keepdims=True) + p["b4"]
    return jax.nn.sigmoid(logits)


if __name__ == "__main__":
    key = jax.random.PRNGKey(0)
    kx, kp, kx2 = jax.random.split(key, 3)

    B, INPUT_SHAPE = 8, 15  # fc2's in-features (15) hints input_shape = 15
    x = jax.random.normal(kx, (B, INPUT_SHAPE), dtype=jnp.float32)
    params = init_params(kp, INPUT_SHAPE)

    out = jax.block_until_ready(net_forward(x, params))
    assert out.shape == (B, 1)
    ref32 = net_forward_ref_f32(x, params)
    ref16 = net_forward_ref_bf16(x, params)
    # bf16-input matmuls: loose check vs full-f32 ref, tight check vs matched ref.
    assert jnp.allclose(out, ref32, atol=2e-2, rtol=2e-2), "mismatch vs f32 reference"
    assert jnp.allclose(out, ref16, atol=2e-3, rtol=2e-3), "mismatch vs bf16 reference"

    # Exercise the multi-step grid + ragged last block (B not a tile multiple).
    B2 = 300
    x2 = jax.random.normal(kx2, (B2, INPUT_SHAPE), dtype=jnp.float32)
    out2 = jax.block_until_ready(net_forward(x2, params, tb=256))
    assert out2.shape == (B2, 1)
    ref2_32 = net_forward_ref_f32(x2, params)
    ref2_16 = net_forward_ref_bf16(x2, params)
    assert jnp.allclose(out2, ref2_32, atol=2e-2, rtol=2e-2), "mismatch (tiled, f32 ref)"
    assert jnp.allclose(out2, ref2_16, atol=2e-3, rtol=2e-3), "mismatch (tiled, bf16 ref)"

    print("KERNEL_OK")
</pallas_src>

<mosaic_0001>
module attributes {stable_mosaic.version = 11 : i64} {
  func.func @_net_kernel(%arg0: i32, %arg1: memref<15x8xbf16, #tpu.memory_space<vmem>>, %arg2: memref<32x15xbf16, #tpu.memory_space<vmem>>, %arg3: memref<32x1xf32, #tpu.memory_space<vmem>>, %arg4: memref<16x32xbf16, #tpu.memory_space<vmem>>, %arg5: memref<16x1xf32, #tpu.memory_space<vmem>>, %arg6: memref<16x1xf32, #tpu.memory_space<vmem>>, %arg7: memref<1x1xf32, #tpu.memory_space<vmem>>, %arg8: memref<1x8xf32, #tpu.memory_space<vmem>>) attributes {dimension_semantics = [#tpu.dimension_semantics<parallel>], iteration_bounds = array<i64: 1>, scalar_prefetch = 0 : i64, scratch_operands = 0 : i64, tpu.core_type = #tpu.core_type<tc>, window_params = [{transform_indices = @transform_0, window_bounds = array<i64: 15, 8>}, {pipeline_mode = #tpu.pipeline_mode<synchronous>, transform_indices = @transform_1, window_bounds = array<i64: 32, 15>}, {pipeline_mode = #tpu.pipeline_mode<synchronous>, transform_indices = @transform_2, window_bounds = array<i64: 32, 1>}, {pipeline_mode = #tpu.pipeline_mode<synchronous>, transform_indices = @transform_3, window_bounds = array<i64: 16, 32>}, {pipeline_mode = #tpu.pipeline_mode<synchronous>, transform_indices = @transform_4, window_bounds = array<i64: 16, 1>}, {pipeline_mode = #tpu.pipeline_mode<synchronous>, transform_indices = @transform_5, window_bounds = array<i64: 16, 1>}, {pipeline_mode = #tpu.pipeline_mode<synchronous>, transform_indices = @transform_6, window_bounds = array<i64: 1, 1>}, {transform_indices = @transform_7, window_bounds = array<i64: 1, 8>}]} {
    %c0 = arith.constant 0 : index
    %c0_0 = arith.constant 0 : index
    %0 = vector.load %arg1[%c0, %c0_0] : memref<15x8xbf16, #tpu.memory_space<vmem>>, vector<15x8xbf16>
    %c0_1 = arith.constant 0 : index
    %c0_2 = arith.constant 0 : index
    %1 = vector.load %arg2[%c0_1, %c0_2] : memref<32x15xbf16, #tpu.memory_space<vmem>>, vector<32x15xbf16>
    %cst = arith.constant dense<0.000000e+00> : vector<32x8xf32>
    %2 = tpu.matmul %1, %0, %cst {dimension_numbers = #tpu.dot_dimension_numbers<[1], [0], [0], [1], [0, 0, 1, 1], [], []>} : vector<32x15xbf16>, vector<15x8xbf16>, vector<32x8xf32> -> vector<32x8xf32>
    %c0_3 = arith.constant 0 : index
    %c0_4 = arith.constant 0 : index
    %3 = vector.load %arg3[%c0_3, %c0_4] : memref<32x1xf32, #tpu.memory_space<vmem>>, vector<32x1xf32>
    %4 = vector.broadcast %3 : vector<32x1xf32> to vector<32x8xf32>
    %5 = arith.addf %2, %4 : vector<32x8xf32>
    %cst_5 = arith.constant 0.000000e+00 : f32
    %6 = vector.broadcast %cst_5 : f32 to vector<32x8xf32>
    %7 = arith.maximumf %5, %6 : vector<32x8xf32>
    %c0_6 = arith.constant 0 : index
    %c0_7 = arith.constant 0 : index
    %8 = vector.load %arg4[%c0_6, %c0_7] : memref<16x32xbf16, #tpu.memory_space<vmem>>, vector<16x32xbf16>
    %9 = arith.truncf %7 : vector<32x8xf32> to vector<32x8xbf16>
    %cst_8 = arith.constant dense<0.000000e+00> : vector<16x8xf32>
    %10 = tpu.matmul %8, %9, %cst_8 {dimension_numbers = #tpu.dot_dimension_numbers<[1], [0], [0], [1], [0, 0, 1, 1], [], []>} : vector<16x32xbf16>, vector<32x8xbf16>, vector<16x8xf32> -> vector<16x8xf32>
    %c0_9 = arith.constant 0 : index
    %c0_10 = arith.constant 0 : index
    %11 = vector.load %arg5[%c0_9, %c0_10] : memref<16x1xf32, #tpu.memory_space<vmem>>, vector<16x1xf32>
    %12 = vector.broadcast %11 : vector<16x1xf32> to vector<16x8xf32>
    %13 = arith.addf %10, %12 : vector<16x8xf32>
    %cst_11 = arith.constant 0.000000e+00 : f32
    %14 = vector.broadcast %cst_11 : f32 to vector<16x8xf32>
    %15 = arith.maximumf %13, %14 : vector<16x8xf32>
    %c0_12 = arith.constant 0 : index
    %c0_13 = arith.constant 0 : index
    %16 = vector.load %arg6[%c0_12, %c0_13] : memref<16x1xf32, #tpu.memory_space<vmem>>, vector<16x1xf32>
    %17 = vector.broadcast %16 : vector<16x1xf32> to vector<16x8xf32>
    %18 = arith.mulf %17, %15 : vector<16x8xf32>
    %cst_14 = arith.constant dense<0.000000e+00> : vector<8xf32>
    %19 = vector.multi_reduction <add>, %18, %cst_14 [0] : vector<16x8xf32> to vector<8xf32>
    %20 = vector.shape_cast %19 : vector<8xf32> to vector<1x8xf32>
    %c0_15 = arith.constant 0 : index
    %c0_16 = arith.constant 0 : index
    %21 = vector.load %arg7[%c0_15, %c0_16] : memref<1x1xf32, #tpu.memory_space<vmem>>, vector<1x1xf32>
    %22 = vector.broadcast %21 : vector<1x1xf32> to vector<1x8xf32>
    %23 = arith.addf %20, %22 : vector<1x8xf32>
    %24 = arith.negf %23 : vector<1x8xf32>
    %25 = math.exp %24 : vector<1x8xf32>
    %cst_17 = arith.constant 1.000000e+00 : f32
    %26 = vector.broadcast %cst_17 : f32 to vector<1x8xf32>
    %27 = arith.addf %26, %25 : vector<1x8xf32>
    %28 = arith.divf %26, %27 : vector<1x8xf32>
    %c0_18 = arith.constant 0 : index
    %c0_19 = arith.constant 0 : index
    %29 = vector.load %arg8[%c0_18, %c0_19] : memref<1x8xf32, #tpu.memory_space<vmem>>, vector<1x8xf32>
    tpu.vector_store %arg8[%c0_18, %c0_19], %28 {strides = array<i32>} : memref<1x8xf32, #tpu.memory_space<vmem>>, vector<1x8xf32>,
    return
  }
  func.func @transform_0(%arg0: i32) -> (i32, i32) {
    %c0_i32 = arith.constant 0 : i32
    %c0_i32_0 = arith.constant 0 : i32
    return %c0_i32, %arg0 : i32, i32
  }
  func.func @transform_1(%arg0: i32) -> (i32, i32) {
    %c0_i32 = arith.constant 0 : i32
    %c0_i32_0 = arith.constant 0 : i32
    %c0_i32_1 = arith.constant 0 : i32
    return %c0_i32, %c0_i32_0 : i32, i32
  }
  func.func @transform_2(%arg0: i32) -> (i32, i32) {
    %c0_i32 = arith.constant 0 : i32
    %c0_i32_0 = arith.constant 0 : i32
    %c0_i32_1 = arith.constant 0 : i32
    return %c0_i32, %c0_i32_0 : i32, i32
  }
  func.func @transform_3(%arg0: i32) -> (i32, i32) {
    %c0_i32 = arith.constant 0 : i32
    %c0_i32_0 = arith.constant 0 : i32
    %c0_i32_1 = arith.constant 0 : i32
    return %c0_i32, %c0_i32_0 : i32, i32
  }
  func.func @transform_4(%arg0: i32) -> (i32, i32) {
    %c0_i32 = arith.constant 0 : i32
    %c0_i32_0 = arith.constant 0 : i32
    %c0_i32_1 = arith.constant 0 : i32
    return %c0_i32, %c0_i32_0 : i32, i32
  }
  func.func @transform_5(%arg0: i32) -> (i32, i32) {
    %c0_i32 = arith.constant 0 : i32
    %c0_i32_0 = arith.constant 0 : i32
    %c0_i32_1 = arith.constant 0 : i32
    return %c0_i32, %c0_i32_0 : i32, i32
  }
  func.func @transform_6(%arg0: i32) -> (i32, i32) {
    %c0_i32 = arith.constant 0 : i32
    %c0_i32_0 = arith.constant 0 : i32
    %c0_i32_1 = arith.constant 0 : i32
    return %c0_i32, %c0_i32_0 : i32, i32
  }
  func.func @transform_7(%arg0: i32) -> (i32, i32) {
    %c0_i32 = arith.constant 0 : i32
    %c0_i32_0 = arith.constant 0 : i32
    return %c0_i32, %arg0 : i32, i32
  }
}

</mosaic_0001>

<llo_original>
// kernel: tpu_custom_call.1
$region0: #{tpu_custom_call.1}
  #allocation0 [shape = 'u32[]', space=smem, size = 0x4, offset = 0x4, fixed_abs, tag = 'smem constant byte address 0x4 - core index']
  #allocation1 [shape = 'u32[144,128]{1,0:T(1,128)}', space=vmem, size = 0x12000, scoped, tag = 'internal scratch']
  #allocation2 [shape = 'f32[1,1]{1,0:T(1,128)S(1)}', space=vmem, size = 0x200, scoped, tag = 'scoped memory for tpu_custom_call.1']
  %s0 = inlined_call_operand.vmem [shape: bf16[15,8], index: 0, kind: input, shape index: {}]
  %s1 = inlined_call_operand.vmem [shape: bf16[32,15], index: 1, kind: input, shape index: {}]
  %s2 = inlined_call_operand.vmem [shape: f32[32,1], index: 2, kind: input, shape index: {}]
  %s3 = inlined_call_operand.vmem [shape: bf16[16,32], index: 3, kind: input, shape index: {}]
  %s4 = inlined_call_operand.vmem [shape: f32[16,1], index: 4, kind: input, shape index: {}]
  %s5 = inlined_call_operand.vmem [shape: f32[16,1], index: 5, kind: input, shape index: {}]
  %s6 = inlined_call_operand.<no memory space> [shape: f32[1,1], index: 6, kind: input, shape index: {}]
  %s7 = inlined_call_operand.hbm [shape: f32[1,8], index: 7, kind: output, shape index: {}]
  %s8 = sld [smem:[#allocation0]]
  $region38: #{tpu_custom_call.1} parent=0
    _
  %s10 = ssub.s32 1, %s8
  %s11 = scalar_select 0, %s10, %s8
  %v12 = vstv %s6
  %13 = vst [vmem:[#allocation2] sm:$0x1] %v12
  $region1: #{tpu_custom_call.1} parent=0
    #allocation3 [shape = 'u8[512]{0}', space=vmem, size = 0x400, scoped, tag = 'output window, operand 0, single buffered']
    #allocation4 [shape = 's32[1]{0}', space=sflag, size = 0x4, scoped, tag = 'scoped memory for tpu_custom_call.1']
    %14 = vsyncpa [#allocation4], 0
    // Predicated region
    $region2: #{tpu_custom_call.1} parent=1 // pred_check
      _
    $region3: #{tpu_custom_call.1} parent=1 // pred_check_branch
      %16 = sbr.rel (0) target = $region5
    $region4: #{tpu_custom_call.1} parent=1 // pred_region
      _
    $region5: #{tpu_custom_call.1} parent=1 // pred_fallthru
      _
    // Predicated region
    $region6: #{tpu_custom_call.1} parent=1 // pred_check
      _
    $region7: #{tpu_custom_call.1} parent=1 // pred_check_branch
      %18 = sbr.rel (0) target = $region9
    $region8: #{tpu_custom_call.1} parent=1 // pred_region
      _
    $region9: #{tpu_custom_call.1} parent=1 // pred_fallthru
      _
    // Predicated region
    $region10: #{tpu_custom_call.1} parent=1 // pred_check
      _
    $region11: #{tpu_custom_call.1} parent=1 // pred_check_branch
      %20 = sbr.rel (0) target = $region13
    $region12: #{tpu_custom_call.1} parent=1 // pred_region
      _
    $region13: #{tpu_custom_call.1} parent=1 // pred_fallthru
      _
    // Predicated region
    $region14: #{tpu_custom_call.1} parent=1 // pred_check
      _
    $region15: #{tpu_custom_call.1} parent=1 // pred_check_branch
      %22 = sbr.rel (0) target = $region17
    $region16: #{tpu_custom_call.1} parent=1 // pred_region
      _
    $region17: #{tpu_custom_call.1} parent=1 // pred_fallthru
      _
    // Predicated region
    $region18: #{tpu_custom_call.1} parent=1 // pred_check
      _
    $region19: #{tpu_custom_call.1} parent=1 // pred_check_branch
      %24 = sbr.rel (0) target = $region21
    $region20: #{tpu_custom_call.1} parent=1 // pred_region
      _
    $region21: #{tpu_custom_call.1} parent=1 // pred_fallthru
      _
    // Predicated region
    $region22: #{tpu_custom_call.1} parent=1 // pred_check
      _
    $region23: #{tpu_custom_call.1} parent=1 // pred_check_branch
      %26 = sbr.rel (0) target = $region25
    $region24: #{tpu_custom_call.1} parent=1 // pred_region
      _
    $region25: #{tpu_custom_call.1} parent=1 // pred_fallthru
      _
    // Predicated region
    $region26: #{tpu_custom_call.1} parent=1 // pred_check
      _
    $region27: #{tpu_custom_call.1} parent=1 // pred_check_branch
      %28 = sbr.rel (0) target = $region29
    $region28: #{tpu_custom_call.1} parent=1 // pred_region
      _
    $region29: #{tpu_custom_call.1} parent=1 // pred_fallthru
      _
    %v30 = vld [vmem:[%s0] sm:$0xf]
    %v31 = vld [vmem:[%s0 + $0x4] sm:$0xf]
    %v32 = vld [vmem:[%s1] sm:$0xf]
    %v33 = vld [vmem:[%s1 + $0x4] sm:$0xf]
    %v34 = vld [vmem:[%s1 + $0x8] sm:$0xf]
    %v35 = vld [vmem:[%s1 + $0xc] sm:$0xf]
    %v36 = vld [vmem:[%s2] sm:$0xff]
    %v37 = vld [vmem:[%s2 + $0x8] sm:$0xff]
    %v38 = vld [vmem:[%s2 + $0x10] sm:$0xff]
    %v39 = vld [vmem:[%s2 + $0x18] sm:$0xff]
    %41 = vset.pattern.permute.xlu0 0
    %42 = vperm.xlu0 %41, %v36
    %v43 = vpop.permute.xlu0 %42
    %46 = vset.pattern.permute.xlu0 0
    %47 = vperm.xlu0 %46, %v37
    %v48 = vpop.permute.xlu0 %47
    %51 = vset.pattern.permute.xlu0 0
    %52 = vperm.xlu0 %51, %v38
    %v53 = vpop.permute.xlu0 %52
    %56 = vset.pattern.permute.xlu0 0
    %57 = vperm.xlu0 %56, %v39
    %v58 = vpop.permute.xlu0 %57
    %v64 = vunpack.c.l.b16 %v32
    %v65 = vunpack.c.l.b16 %v33
    %v66 = vunpack.c.l.b16 %v34
    %v67 = vunpack.c.l.b16 %v35
    %v68 = vpack.c.b16 %v65, %v64
    %v69 = vpack.c.b16 %v67, %v66
    %v72 = vunpack.c.l.b16 %v30
    %v73 = vunpack.c.l.b16 %v31
    %v74 = vpack.c.b16 %v73, %v72
    %vm75 = vcmask 121856
    %v77 = vsel %vm75, %v68, 0
    %v80 = vsel %vm75, %v69, 0
    %vm82 = vcmask 1046528
    %vm83 = vcmask 1047552
    %v84 = vsel %vm82, 4294967295, 65535
    %v85 = vsel %vm83, %v84, 0
    %v87 = vand.u32 %v74, %v85
    %89 = vmatprep.subr.bf16.mxu0 0
    %90 = vmatpush1.bf16.msra.mxu0 0
    %91 = vmatprep.subr.bf16.mxu0 0
    %92 = vmatpush1.bf16.msra.mxu0 0
    %93 = vmatprep.subr.bf16.mxu0 0
    %94 = vmatpush1.bf16.msra.mxu0 0
    %95 = vmatprep.subr.bf16.mxu0 0
    %96 = vmatpush1.bf16.msra.mxu0 0
    %97 = vmatprep.subr.bf16.mxu0 0
    %98 = vmatpush1.bf16.msra.mxu0 0
    %99 = vmatprep.subr.bf16.mxu0 0
    %100 = vmatpush1.bf16.msra.mxu0 0
    %101 = vmatprep.subr.bf16.mxu0 0
    %102 = vmatpush1.bf16.msra.mxu0 0
    %103 = vmatprep.subr.bf16.mxu0 0
    %104 = vmatpush1.bf16.msra.mxu0 %v87
    %105 = vmatprep.subr.bf16.mxu0 0
    %106 = vmatpush2.bf16.msra.mxu0 0
    %107 = vmatprep.subr.bf16.mxu0 0
    %108 = vmatpush2.bf16.msra.mxu0 0
    %109 = vmatprep.subr.bf16.mxu0 0
    %110 = vmatpush2.bf16.msra.mxu0 0
    %111 = vmatprep.subr.bf16.mxu0 0
    %112 = vmatpush2.bf16.msra.mxu0 0
    %113 = vmatprep.subr.bf16.mxu0 0
    %114 = vmatpush2.bf16.msra.mxu0 0
    %115 = vmatprep.subr.bf16.mxu0 0
    %116 = vmatpush2.bf16.msra.mxu0 0
    %117 = vmatprep.subr.bf16.mxu0 0
    %118 = vmatpush2.bf16.msra.mxu0 0
    %119 = vmatprep.subr.bf16.mxu0 0
    %120 = vmatpush2.bf16.msra.mxu0 0
    %121 = vmatprep.mubr.bf16.mxu0 0
    %122 = vmatmul.mubr.bf16.gmra.mxu0 %v77
    %v123 = vpop.f32.mrf.mxu0
    %v124 = vadd.f32 %v43, %v123
    %v125 = vpop.f32.mrf.mxu0
    %v126 = vpop.f32.mrf.mxu0
    %v127 = vadd.f32 %v48, %v126
    %v128 = vpop.f32.mrf.mxu0
    %129 = vmatprep.mubr.bf16.mxu0 0
    %130 = vmatmul.mubr.bf16.gmra.mxu0 %v80
    %v131 = vpop.f32.mrf.mxu0
    %v132 = vadd.f32 %v53, %v131
    %v133 = vpop.f32.mrf.mxu0
    %v134 = vpop.f32.mrf.mxu0
    %v135 = vadd.f32 %v58, %v134
    %v136 = vpop.f32.mrf.mxu0
    %137 = vdwg.mxu0
    %v138 = vmax.f32 %v124, 0.0
    %v139 = vmax.f32 %v127, 0.0
    %v140 = vmax.f32 %v132, 0.0
    %v141 = vmax.f32 %v135, 0.0
    %v142 = vld [vmem:[%s3] sm:$0xf]
    %v143 = vld [vmem:[%s3 + $0x4] sm:$0xf]
    %v144 = vpack.c.bf16 %v139, %v138
    %v145 = vpack.c.bf16 %v141, %v140
    %v146 = vld [vmem:[%s4] sm:$0xff]
    %v147 = vld [vmem:[%s4 + $0x8] sm:$0xff]
    %149 = vset.pattern.permute.xlu0 0
    %150 = vperm.xlu0 %149, %v146
    %v151 = vpop.permute.xlu0 %150
    %154 = vset.pattern.permute.xlu0 0
    %155 = vperm.xlu0 %154, %v147
    %v156 = vpop.permute.xlu0 %155
    %v160 = vunpack.c.l.b16 %v142
    %v161 = vunpack.c.l.b16 %v143
    %v162 = vpack.c.b16 %v161, %v160
    %vm163 = vcmask 261120
    %v165 = vsel %vm163, %v162, 0
    %167 = vmatprep.subr.bf16.mxu0 0
    %168 = vmatpush1.bf16.msra.mxu0 0
    %169 = vmatprep.subr.bf16.mxu0 0
    %170 = vmatpush1.bf16.msra.mxu0 0
    %171 = vmatprep.subr.bf16.mxu0 0
    %172 = vmatpush1.bf16.msra.mxu0 0
    %173 = vmatprep.subr.bf16.mxu0 0
    %174 = vmatpush1.bf16.msra.mxu0 0
    %175 = vmatprep.subr.bf16.mxu0 0
    %176 = vmatpush1.bf16.msra.mxu0 0
    %177 = vmatprep.subr.bf16.mxu0 0
    %178 = vmatpush1.bf16.msra.mxu0 0
    %179 = vmatprep.subr.bf16.mxu0 0
    %180 = vmatpush1.bf16.msra.mxu0 %v145
    %181 = vmatprep.subr.bf16.mxu0 0
    %182 = vmatpush1.bf16.msra.mxu0 %v144
    %183 = vmatprep.subr.bf16.mxu0 0
    %184 = vmatpush2.bf16.msra.mxu0 0
    %185 = vmatprep.subr.bf16.mxu0 0
    %186 = vmatpush2.bf16.msra.mxu0 0
    %187 = vmatprep.subr.bf16.mxu0 0
    %188 = vmatpush2.bf16.msra.mxu0 0
    %189 = vmatprep.subr.bf16.mxu0 0
    %190 = vmatpush2.bf16.msra.mxu0 0
    %191 = vmatprep.subr.bf16.mxu0 0
    %192 = vmatpush2.bf16.msra.mxu0 0
    %193 = vmatprep.subr.bf16.mxu0 0
    %194 = vmatpush2.bf16.msra.mxu0 0
    %195 = vmatprep.subr.bf16.mxu0 0
    %196 = vmatpush2.bf16.msra.mxu0 0
    %197 = vmatprep.subr.bf16.mxu0 0
    %198 = vmatpush2.bf16.msra.mxu0 0
    %199 = vmatprep.mubr.bf16.mxu0 0
    %200 = vmatmul.mubr.bf16.gmra.mxu0 %v165
    %v201 = vpop.f32.mrf.mxu0
    %v202 = vadd.f32 %v151, %v201
    %v203 = vpop.f32.mrf.mxu0
    %v204 = vpop.f32.mrf.mxu0
    %v205 = vadd.f32 %v156, %v204
    %v206 = vpop.f32.mrf.mxu0
    %207 = vdwg.mxu0
    %v208 = vmax.f32 %v202, 0.0
    %v209 = vmax.f32 %v205, 0.0
    %v210 = vld [vmem:[%s5] sm:$0xff]
    %v211 = vld [vmem:[%s5 + $0x8] sm:$0xff]
    %213 = vset.pattern.permute.xlu0 0
    %214 = vperm.xlu0 %213, %v210
    %v215 = vpop.permute.xlu0 %214
    %218 = vset.pattern.permute.xlu0 0
    %219 = vperm.xlu0 %218, %v211
    %v220 = vpop.permute.xlu0 %219
    %v222 = vmul.f32 %v215, %v208
    %v223 = vmul.f32 %v220, %v209
    %vm224 = vcmask 64512
    %v225 = vsel %vm224, %v222, 0.0
    %v226 = vsel %vm224, %v223, 0.0
    %v227 = vadd.f32 %v225, %v226
    %v228 = vrot.slane %v227, 4
    %v229 = vadd.f32 %v227, %v228
    %v230 = vrot.slane %v229, 2
    %v231 = vadd.f32 %v229, %v230
    %v232 = vrot.slane %v231, 1
    %v233 = vadd.f32 %v231, %v232
    %v234 = vld [vmem:[#allocation2] sm:$0x1]
    %236 = vset.pattern.permute.xlu0 0
    %237 = vperm.xlu0 %236, %v234
    %v238 = vpop.permute.xlu0 %237
    %v240 = vlaneseq
    %v241 = vshrl.u32 %v240, 7
    %v242 = vsub.s32 0, %v241
    %v243 = vrot.slane %v238, %v242
    %v244 = vadd.f32 %v233, %v243
    %v245 = vxor.u32 %v244, 2147483648
    %v246 = vmul.f32 %v245, 1.442695
    %v247 = vpow.pop %v246
    %v248 = vadd.f32 %v247, 1.0
    %v249 = vrcp.pop %v248
    %v250 = vmul.f32 1.0, %v249
    %vm251 = vcmask 57344
    %252 = vst.msk [vmem:[#allocation3] sm:$0x1] %vm251, %v250
    // Predicated region
    $region30: #{tpu_custom_call.1} parent=1 // pred_check
      _
    $region31: #{tpu_custom_call.1} parent=1 // pred_check_branch
      %254 = sbr.rel (0) target = $region33
    $region32: #{tpu_custom_call.1} parent=1 // pred_region
      %s256 = ssub.s32 16, 16
      %257 = vsyncadd [#allocation4], %s256
      %s259 = sshll.u32 [#allocation3], 4
      %s260 = int_to_ptr.vmem [resolvable:$true] %s259
      %262 = dma.vmem_to_hbm [thread:$0]  %s260, 16, %s7, [#allocation4]
    $region33: #{tpu_custom_call.1} parent=1 // pred_fallthru
      _
    // Predicated region
    $region34: #{tpu_custom_call.1} parent=1 // pred_check
      _
    $region35: #{tpu_custom_call.1} parent=1 // pred_check_branch
      %264 = sbr.rel (0) target = $region37
    $region36: #{tpu_custom_call.1} parent=1 // pred_region
      %265 = dma.done [#allocation4], 16
    $region37: #{tpu_custom_call.1} parent=1 // pred_fallthru
      _
    %266 = vsyncpa [#allocation4], 1

</llo_original>
